<compile_context>
chip_gen: v7x
topology: tpu7x:2x2x1
jax: 0.10.0
libtpu: 0.0.40
codegen_flags: <defaults>
</compile_context>

<pallas_src>
import numpy as np
import jax
import jax.numpy as jnp
from jax import lax
from jax.experimental import pallas as pl
from jax.experimental.pallas import tpu as pltpu


# ----------------------------------------------------------------------------
# Host-side helpers (run at trace time only; baked in as constants)
# ----------------------------------------------------------------------------
def bilinear_matrix(out_size: int, in_size: int) -> np.ndarray:
    """1-D bilinear interpolation matrix, PyTorch align_corners=False semantics."""
    M = np.zeros((out_size, in_size), dtype=np.float32)
    if in_size == 1:
        M[:, 0] = 1.0
        return M
    scale = in_size / out_size
    for d in range(out_size):
        src = (d + 0.5) * scale - 0.5
        src = max(src, 0.0)
        i0 = min(int(np.floor(src)), in_size - 1)
        i1 = min(i0 + 1, in_size - 1)
        frac = src - i0
        M[d, i0] += 1.0 - frac
        M[d, i1] += frac
    return M


def _upsample_blockdiag(N: int, H: int, W: int, Hf: int, Wf: int) -> np.ndarray:
    """Block-diagonal transposed upsample matrix: (N*Hf*Wf, N*H*W)."""
    m = np.kron(bilinear_matrix(H, Hf), bilinear_matrix(W, Wf)).T  # (Hf*Wf, H*W)
    return np.kron(np.eye(N, dtype=np.float32), m).astype(np.float32)


def im2col_T(x: jax.Array) -> jax.Array:
    """x: (N, C, H, W) -> transposed patches (C*9, N*Hf*Wf) for the 3x3/s2 conv.

    Row order (cin, kh, kw) matches w_bb.reshape(Cf, Cin*9); column order
    (n, hf, wf) matches the kernel's spatial-on-lanes layout.  Runs inside the
    jitted wrapper, so the pad/stack/transpose chain fuses into one executable.
    """
    N, C, H, W = x.shape
    Hf, Wf = H // 2, W // 2
    xp = jnp.pad(x, ((0, 0), (0, 0), (1, 1), (1, 1)))
    cols = []
    for kh in range(3):
        for kw in range(3):
            cols.append(xp[:, :, kh:kh + 2 * Hf:2, kw:kw + 2 * Wf:2])  # (N,C,Hf,Wf)
    p = jnp.stack(cols, axis=2).reshape(N, C, 3, 3, Hf, Wf)
    return p.transpose(1, 2, 3, 0, 4, 5).reshape(C * 9, N * Hf * Wf)


# ----------------------------------------------------------------------------
# Pallas kernel: conv-as-matmul + ReLU + 1x1 classifier + bilinear upsample.
# Biases are pre-folded into the weight operands (homogeneous ones-row trick),
# so the kernel is exactly three MXU matmuls and one VPU max.
# ----------------------------------------------------------------------------
def seg_kernel(pT_ref, wbb_ref, wcls_ref, mT_ref, out_ref):
    # Backbone 3x3/s2 conv (+ bias via the ones-row) and ReLU:
    #   (Cfp=16, 40) @ (40, N*Hf*Wf=128) -> (16, 128); row Cf stays == 1 (ones row).
    feat = jnp.maximum(
        jnp.dot(wbb_ref[...], pT_ref[...], preferred_element_type=jnp.float32), 0.0)
    # 1x1 classifier (+ bias via feat's ones row): (Kp=8, 16) @ (16, 128) -> (8, 128).
    logits = jnp.dot(wcls_ref[...], feat, preferred_element_type=jnp.float32)
    # Bilinear upsample for the whole batch in one lane-dense matmul:
    #   (8, 128) @ block-diag (128, N*H*W=512) -> (8, 512), unmasked store.
    out_ref[...] = jnp.dot(logits, mT_ref[...], preferred_element_type=jnp.float32)


@jax.jit
def simple_segmentation_forward(x, w_bb, b_bb, w_cls, b_cls):
    """x: (N, Cin, H, W) f32 -> out: (N, K, H, W) f32 (result['out'])."""
    N, Cin, H, W = x.shape
    Cf = w_bb.shape[0]
    K = w_cls.shape[0]
    Hf, Wf = H // 2, W // 2
    L = N * Hf * Wf                       # lane width of the feature stage (128)

    # --- operand packing (fused into this jitted executable) -----------------
    R = Cin * 9 + 1                       # patch rows + ones row
    Rp = -(-R // 8) * 8                   # -> 40 (whole sublanes for f32)
    Cfp = -(-(Cf + 1) // 8) * 8           # -> 16 (Cf feature rows + ones row, padded)
    Kp = -(-K // 8) * 8                   # -> 8  (padded class rows)

    # Transposed im2col patches with an appended ones-row (folds b_bb).
    pT_aug = jnp.zeros((Rp, L), jnp.float32)
    pT_aug = pT_aug.at[:Cin * 9].set(im2col_T(x))
    pT_aug = pT_aug.at[Cin * 9].set(1.0)

    # Backbone weight with bias column + a "ones generator" row at index Cf.
    wbb_aug = jnp.zeros((Cfp, Rp), jnp.float32)
    wbb_aug = wbb_aug.at[:Cf, :Cin * 9].set(w_bb.reshape(Cf, Cin * 9))
    wbb_aug = wbb_aug.at[:Cf, Cin * 9].set(b_bb)
    wbb_aug = wbb_aug.at[Cf, Cin * 9].set(1.0)

    # Classifier weight with its bias in column Cf (multiplies feat's ones row).
    wcls_aug = jnp.zeros((Kp, Cfp), jnp.float32)
    wcls_aug = wcls_aug.at[:K, :Cf].set(w_cls.reshape(K, Cf))
    wcls_aug = wcls_aug.at[:K, Cf].set(b_cls)

    # Block-diagonal bilinear-upsample matrix (host numpy at trace time only).
    mT_bd = jnp.asarray(_upsample_blockdiag(N, H, W, Hf, Wf))   # (L, N*H*W)

    out = pl.pallas_call(
        seg_kernel,
        out_shape=jax.ShapeDtypeStruct((Kp, N * H * W), jnp.float32),
        # No grid: the whole (tiny) problem is VMEM-resident in one invocation.
        in_specs=[pl.BlockSpec(memory_space=pltpu.MemorySpace.VMEM)] * 4,
        out_specs=pl.BlockSpec(memory_space=pltpu.MemorySpace.VMEM),
    )(pT_aug, wbb_aug, wcls_aug, mT_bd)

    # Lane-dense kernel output (Kp, N*H*W) -> NCHW; slice the K padding away.
    return out.reshape(Kp, N, H, W)[:K].transpose(1, 0, 2, 3)


# ----------------------------------------------------------------------------
# Pure-JAX f32 reference (XLA conv) for correctness
# ----------------------------------------------------------------------------
def reference_forward(x, w_bb, b_bb, w_cls, b_cls):
    N, Cin, H, W = x.shape
    Cf = w_bb.shape[0]
    K = w_cls.shape[0]
    Hf, Wf = H // 2, W // 2
    feat = lax.conv_general_dilated(
        x, w_bb, window_strides=(2, 2), padding=((1, 1), (1, 1)),
        dimension_numbers=("NCHW", "OIHW", "NCHW"))
    feat = jnp.maximum(feat + b_bb.reshape(1, Cf, 1, 1), 0.0)
    logits = jnp.einsum("ncHW,kc->nkHW", feat, w_cls.reshape(K, Cf)) \
             + b_cls.reshape(1, K, 1, 1)
    Mh = jnp.asarray(bilinear_matrix(H, Hf))
    Mw = jnp.asarray(bilinear_matrix(W, Wf))
    return jnp.einsum("hH,nkHW,wW->nkhw", Mh, logits, Mw)


if __name__ == "__main__":
    N, Cin, H, W = 2, 4, 16, 16
    Cf, K = 8, 6

    key = jax.random.PRNGKey(0)
    kx, k1, k2, k3, k4 = jax.random.split(key, 5)
    x = jax.random.normal(kx, (N, Cin, H, W), dtype=jnp.float32)
    w_bb = jax.random.normal(k1, (Cf, Cin, 3, 3), dtype=jnp.float32) * 0.1
    b_bb = jax.random.normal(k2, (Cf,), dtype=jnp.float32) * 0.1
    w_cls = jax.random.normal(k3, (K, Cf, 1, 1), dtype=jnp.float32) * 0.1
    b_cls = jax.random.normal(k4, (K,), dtype=jnp.float32) * 0.1

    out = jax.block_until_ready(
        simple_segmentation_forward(x, w_bb, b_bb, w_cls, b_cls))
    ref = jax.block_until_ready(reference_forward(x, w_bb, b_bb, w_cls, b_cls))

    assert out.shape == (N, K, H, W), out.shape
    # Default-precision MXU matmuls on both sides -> loosened tolerance.
    np.testing.assert_allclose(np.asarray(out), np.asarray(ref), rtol=2e-2, atol=2e-2)

    print("KERNEL_OK")
</pallas_src>

<mosaic_0001>
module attributes {stable_mosaic.version = 11 : i64} {
  func.func @seg_kernel(%arg0: memref<40x128xf32, #tpu.memory_space<vmem>>, %arg1: memref<16x40xf32, #tpu.memory_space<vmem>>, %arg2: memref<8x16xf32, #tpu.memory_space<vmem>>, %arg3: memref<128x512xf32, #tpu.memory_space<vmem>>, %arg4: memref<8x512xf32, #tpu.memory_space<vmem>>) attributes {dimension_semantics = [], scalar_prefetch = 0 : i64, scratch_operands = 0 : i64, tpu.core_type = #tpu.core_type<tc>} {
    %c0 = arith.constant 0 : index
    %c0_0 = arith.constant 0 : index
    %0 = vector.load %arg1[%c0, %c0_0] : memref<16x40xf32, #tpu.memory_space<vmem>>, vector<16x40xf32>
    %c0_1 = arith.constant 0 : index
    %c0_2 = arith.constant 0 : index
    %1 = vector.load %arg0[%c0_1, %c0_2] : memref<40x128xf32, #tpu.memory_space<vmem>>, vector<40x128xf32>
    %cst = arith.constant dense<0.000000e+00> : vector<16x128xf32>
    %2 = tpu.matmul %0, %1, %cst {dimension_numbers = #tpu.dot_dimension_numbers<[1], [0], [0], [1], [0, 0, 1, 1], [], []>} : vector<16x40xf32>, vector<40x128xf32>, vector<16x128xf32> -> vector<16x128xf32>
    %cst_3 = arith.constant 0.000000e+00 : f32
    %3 = vector.broadcast %cst_3 : f32 to vector<16x128xf32>
    %4 = arith.maximumf %2, %3 : vector<16x128xf32>
    %c0_4 = arith.constant 0 : index
    %c0_5 = arith.constant 0 : index
    %5 = vector.load %arg2[%c0_4, %c0_5] : memref<8x16xf32, #tpu.memory_space<vmem>>, vector<8x16xf32>
    %cst_6 = arith.constant dense<0.000000e+00> : vector<8x128xf32>
    %6 = tpu.matmul %5, %4, %cst_6 {dimension_numbers = #tpu.dot_dimension_numbers<[1], [0], [0], [1], [0, 0, 1, 1], [], []>} : vector<8x16xf32>, vector<16x128xf32>, vector<8x128xf32> -> vector<8x128xf32>
    %c0_7 = arith.constant 0 : index
    %c0_8 = arith.constant 0 : index
    %7 = vector.load %arg3[%c0_7, %c0_8] : memref<128x512xf32, #tpu.memory_space<vmem>>, vector<128x512xf32>
    %cst_9 = arith.constant dense<0.000000e+00> : vector<8x512xf32>
    %8 = tpu.matmul %6, %7, %cst_9 {dimension_numbers = #tpu.dot_dimension_numbers<[1], [0], [0], [1], [0, 0, 1, 1], [], []>} : vector<8x128xf32>, vector<128x512xf32>, vector<8x512xf32> -> vector<8x512xf32>
    %c0_10 = arith.constant 0 : index
    %c0_11 = arith.constant 0 : index
    %9 = vector.load %arg4[%c0_10, %c0_11] : memref<8x512xf32, #tpu.memory_space<vmem>>, vector<8x512xf32>
    tpu.vector_store %arg4[%c0_10, %c0_11], %8 {strides = array<i32>} : memref<8x512xf32, #tpu.memory_space<vmem>>, vector<8x512xf32>,
    return
  }
}

</mosaic_0001>

<llo_original>
// kernel: simple_segmentation_forward.1
$region0: #{simple_segmentation_forward.1}
  #allocation0 [shape = 'u32[]', space=smem, size = 0x4, offset = 0x4, fixed_abs, tag = 'smem constant byte address 0x4 - core index']
  #allocation1 [shape = 'u32[144,128]{1,0:T(1,128)}', space=vmem, size = 0x12000, scoped, tag = 'internal scratch']
  %s0 = inlined_call_operand.vmem [shape: f32[40,128], index: 0, kind: input, shape index: {}]
  %s1 = inlined_call_operand.vmem [shape: f32[16,40], index: 1, kind: input, shape index: {}]
  %s2 = inlined_call_operand.vmem [shape: f32[8,16], index: 2, kind: input, shape index: {}]
  %s3 = inlined_call_operand.vmem [shape: f32[128,512], index: 3, kind: input, shape index: {}]
  %s4 = inlined_call_operand.vmem [shape: f32[8,512], index: 4, kind: output, shape index: {}]
  %s5 = sld [smem:[#allocation0]]
  $region26: #{simple_segmentation_forward.1} parent=0
    _
  %s7 = ssub.s32 1, %s5
  %s8 = scalar_select 0, %s7, %s5
  // Predicated region
  $region2: #{simple_segmentation_forward.1} parent=0 // pred_check
    _
  $region3: #{simple_segmentation_forward.1} parent=0 // pred_check_branch
    %10 = sbr.rel (0) target = $region5
  $region4: #{simple_segmentation_forward.1} parent=0 // pred_region
    _
  $region5: #{simple_segmentation_forward.1} parent=0 // pred_fallthru
    _
  // Predicated region
  $region6: #{simple_segmentation_forward.1} parent=0 // pred_check
    _
  $region7: #{simple_segmentation_forward.1} parent=0 // pred_check_branch
    %12 = sbr.rel (0) target = $region9
  $region8: #{simple_segmentation_forward.1} parent=0 // pred_region
    _
  $region9: #{simple_segmentation_forward.1} parent=0 // pred_fallthru
    _
  // Predicated region
  $region10: #{simple_segmentation_forward.1} parent=0 // pred_check
    _
  $region11: #{simple_segmentation_forward.1} parent=0 // pred_check_branch
    %14 = sbr.rel (0) target = $region13
  $region12: #{simple_segmentation_forward.1} parent=0 // pred_region
    _
  $region13: #{simple_segmentation_forward.1} parent=0 // pred_fallthru
    _
  // Predicated region
  $region14: #{simple_segmentation_forward.1} parent=0 // pred_check
    _
  $region15: #{simple_segmentation_forward.1} parent=0 // pred_check_branch
    %16 = sbr.rel (0) target = $region17
  $region16: #{simple_segmentation_forward.1} parent=0 // pred_region
    _
  $region17: #{simple_segmentation_forward.1} parent=0 // pred_fallthru
    _
  %v17 = vld [vmem:[%s1] sm:$0xff]
  %v18 = vld [vmem:[%s1 + $0x8] sm:$0xff]
  %v19 = vld [vmem:[%s0] sm:$0xff]
  %v20 = vld [vmem:[%s0 + $0x8] sm:$0xff]
  %v21 = vld [vmem:[%s0 + $0x10] sm:$0xff]
  %v22 = vld [vmem:[%s0 + $0x18] sm:$0xff]
  %v23 = vld [vmem:[%s0 + $0x20] sm:$0xff]
  %vm24 = vcmask 326656
  %v26 = vsel %vm24, %v17, 0
  %v29 = vsel %vm24, %v18, 0
  %31 = vmatprep.subr.mxu0 0.0
  %32 = vmatpush1.msra.mxu0 %v19
  %33 = vmatprep.subr.mxu0 0.0
  %34 = vmatpush1.msra.mxu0 %v20
  %35 = vmatprep.subr.mxu0 0.0
  %36 = vmatpush1.msra.mxu0 %v21
  %37 = vmatprep.subr.mxu0 0.0
  %38 = vmatpush1.msra.mxu0 %v22
  %39 = vmatprep.subr.mxu0 0.0
  %40 = vmatpush1.msra.mxu0 %v23
  %41 = vmatprep.subr.mxu0 0.0
  %42 = vmatpush1.msra.mxu0 0.0
  %43 = vmatprep.subr.mxu0 0.0
  %44 = vmatpush1.msra.mxu0 0.0
  %45 = vmatprep.subr.mxu0 0.0
  %46 = vmatpush1.msra.mxu0 0.0
  %47 = vmatprep.subr.mxu0 0.0
  %48 = vmatpush1.msra.mxu0 0.0
  %49 = vmatprep.subr.mxu0 0.0
  %50 = vmatpush1.msra.mxu0 0.0
  %51 = vmatprep.subr.mxu0 0.0
  %52 = vmatpush1.msra.mxu0 0.0
  %53 = vmatprep.subr.mxu0 0.0
  %54 = vmatpush1.msra.mxu0 0.0
  %55 = vmatprep.subr.mxu0 0.0
  %56 = vmatpush1.msra.mxu0 0.0
  %57 = vmatprep.subr.mxu0 0.0
  %58 = vmatpush1.msra.mxu0 0.0
  %59 = vmatprep.subr.mxu0 0.0
  %60 = vmatpush1.msra.mxu0 0.0
  %61 = vmatprep.subr.mxu0 0.0
  %62 = vmatpush1.msra.mxu0 0.0
  %63 = vmatprep.subr.mxu0 0.0
  %64 = vmatpush1.msra.mxu0 0.0
  %65 = vmatprep.subr.mxu0 0.0
  %66 = vmatpush1.msra.mxu0 0.0
  %67 = vmatprep.subr.mxu0 0.0
  %68 = vmatpush1.msra.mxu0 0.0
  %69 = vmatprep.subr.mxu0 0.0
  %70 = vmatpush1.msra.mxu0 0.0
  %71 = vmatprep.subr.mxu0 0.0
  %72 = vmatpush1.msra.mxu0 0.0
  %73 = vmatprep.subr.mxu0 0.0
  %74 = vmatpush1.msra.mxu0 0.0
  %75 = vmatprep.subr.mxu0 0.0
  %76 = vmatpush1.msra.mxu0 0.0
  %77 = vmatprep.subr.mxu0 0.0
  %78 = vmatpush1.msra.mxu0 0.0
  %79 = vmatprep.subr.mxu0 0.0
  %80 = vmatpush1.msra.mxu0 0.0
  %81 = vmatprep.subr.mxu0 0.0
  %82 = vmatpush1.msra.mxu0 0.0
  %83 = vmatprep.subr.mxu0 0.0
  %84 = vmatpush1.msra.mxu0 0.0
  %85 = vmatprep.subr.mxu0 0.0
  %86 = vmatpush1.msra.mxu0 0.0
  %87 = vmatprep.subr.mxu0 0.0
  %88 = vmatpush1.msra.mxu0 0.0
  %89 = vmatprep.subr.mxu0 0.0
  %90 = vmatpush1.msra.mxu0 0.0
  %91 = vmatprep.subr.mxu0 0.0
  %92 = vmatpush1.msra.mxu0 0.0
  %93 = vmatprep.subr.mxu0 0.0
  %94 = vmatpush1.msra.mxu0 0.0
  %95 = vmatprep.mubr.f32.mxu0 0.0
  %96 = vmatmul.mubr.f32.gmra.mrb[0].mxu0 %v26
  %v97 = vpop.f32.mrb[0].mxu0
  %v98 = vadd.f32 0.0, %v97
  %v99 = vpop.f32.mrb[0].mxu0
  %100 = vmatprep.mubr.f32.mxu0 0.0
  %101 = vmatmul.mubr.f32.gmra.mrb[0].mxu0 %v29
  %v102 = vpop.f32.mrb[0].mxu0
  %v103 = vadd.f32 0.0, %v102
  %v104 = vpop.f32.mrb[0].mxu0
  %105 = vdwg.mxu0
  %v106 = vmax.f32 %v98, 0.0
  %v107 = vmax.f32 %v103, 0.0
  %v108 = vld [vmem:[%s2] sm:$0xff]
  %vm109 = vcmask 130048
  %v111 = vsel %vm109, %v108, 0
  %113 = vmatprep.subr.mxu0 0.0
  %114 = vmatpush1.msra.mxu0 %v106
  %115 = vmatprep.subr.mxu0 0.0
  %116 = vmatpush1.msra.mxu0 %v107
  %117 = vmatprep.subr.mxu0 0.0
  %118 = vmatpush1.msra.mxu0 0.0
  %119 = vmatprep.subr.mxu0 0.0
  %120 = vmatpush1.msra.mxu0 0.0
  %121 = vmatprep.subr.mxu0 0.0
  %122 = vmatpush1.msra.mxu0 0.0
  %123 = vmatprep.subr.mxu0 0.0
  %124 = vmatpush1.msra.mxu0 0.0
  %125 = vmatprep.subr.mxu0 0.0
  %126 = vmatpush1.msra.mxu0 0.0
  %127 = vmatprep.subr.mxu0 0.0
  %128 = vmatpush1.msra.mxu0 0.0
  %129 = vmatprep.subr.mxu0 0.0
  %130 = vmatpush1.msra.mxu0 0.0
  %131 = vmatprep.subr.mxu0 0.0
  %132 = vmatpush1.msra.mxu0 0.0
  %133 = vmatprep.subr.mxu0 0.0
  %134 = vmatpush1.msra.mxu0 0.0
  %135 = vmatprep.subr.mxu0 0.0
  %136 = vmatpush1.msra.mxu0 0.0
  %137 = vmatprep.subr.mxu0 0.0
  %138 = vmatpush1.msra.mxu0 0.0
  %139 = vmatprep.subr.mxu0 0.0
  %140 = vmatpush1.msra.mxu0 0.0
  %141 = vmatprep.subr.mxu0 0.0
  %142 = vmatpush1.msra.mxu0 0.0
  %143 = vmatprep.subr.mxu0 0.0
  %144 = vmatpush1.msra.mxu0 0.0
  %145 = vmatprep.subr.mxu0 0.0
  %146 = vmatpush1.msra.mxu0 0.0
  %147 = vmatprep.subr.mxu0 0.0
  %148 = vmatpush1.msra.mxu0 0.0
  %149 = vmatprep.subr.mxu0 0.0
  %150 = vmatpush1.msra.mxu0 0.0
  %151 = vmatprep.subr.mxu0 0.0
  %152 = vmatpush1.msra.mxu0 0.0
  %153 = vmatprep.subr.mxu0 0.0
  %154 = vmatpush1.msra.mxu0 0.0
  %155 = vmatprep.subr.mxu0 0.0
  %156 = vmatpush1.msra.mxu0 0.0
  %157 = vmatprep.subr.mxu0 0.0
  %158 = vmatpush1.msra.mxu0 0.0
  %159 = vmatprep.subr.mxu0 0.0
  %160 = vmatpush1.msra.mxu0 0.0
  %161 = vmatprep.subr.mxu0 0.0
  %162 = vmatpush1.msra.mxu0 0.0
  %163 = vmatprep.subr.mxu0 0.0
  %164 = vmatpush1.msra.mxu0 0.0
  %165 = vmatprep.subr.mxu0 0.0
  %166 = vmatpush1.msra.mxu0 0.0
  %167 = vmatprep.subr.mxu0 0.0
  %168 = vmatpush1.msra.mxu0 0.0
  %169 = vmatprep.subr.mxu0 0.0
  %170 = vmatpush1.msra.mxu0 0.0
  %171 = vmatprep.subr.mxu0 0.0
  %172 = vmatpush1.msra.mxu0 0.0
  %173 = vmatprep.subr.mxu0 0.0
  %174 = vmatpush1.msra.mxu0 0.0
  %175 = vmatprep.subr.mxu0 0.0
  %176 = vmatpush1.msra.mxu0 0.0
  %177 = vmatprep.mubr.f32.mxu0 0.0
  %178 = vmatmul.mubr.f32.gmra.mrb[0].mxu0 %v111
  %v179 = vpop.f32.mrb[0].mxu0
  %v180 = vadd.f32 0.0, %v179
  %v181 = vpop.f32.mrb[0].mxu0
  %182 = vdwg.mxu0
  %v183 = vld [vmem:[%s3] sm:$0xff]
  %v184 = vld [vmem:[%s3 + $0x8] sm:$0xff]
  %v185 = vld [vmem:[%s3 + $0x10] sm:$0xff]
  %v186 = vld [vmem:[%s3 + $0x18] sm:$0xff]
  %v187 = vld [vmem:[%s3 + $0x20] sm:$0xff]
  %v188 = vld [vmem:[%s3 + $0x28] sm:$0xff]
  %v189 = vld [vmem:[%s3 + $0x30] sm:$0xff]
  %v190 = vld [vmem:[%s3 + $0x38] sm:$0xff]
  %v191 = vld [vmem:[%s3 + $0x40] sm:$0xff]
  %v192 = vld [vmem:[%s3 + $0x48] sm:$0xff]
  %v193 = vld [vmem:[%s3 + $0x50] sm:$0xff]
  %v194 = vld [vmem:[%s3 + $0x58] sm:$0xff]
  %v195 = vld [vmem:[%s3 + $0x60] sm:$0xff]
  %v196 = vld [vmem:[%s3 + $0x68] sm:$0xff]
  %v197 = vld [vmem:[%s3 + $0x70] sm:$0xff]
  %v198 = vld [vmem:[%s3 + $0x78] sm:$0xff]
  %v199 = vld [vmem:[%s3 + $0x80] sm:$0xff]
  %v200 = vld [vmem:[%s3 + $0x88] sm:$0xff]
  %v201 = vld [vmem:[%s3 + $0x90] sm:$0xff]
  %v202 = vld [vmem:[%s3 + $0x98] sm:$0xff]
  %v203 = vld [vmem:[%s3 + $0xa0] sm:$0xff]
  %v204 = vld [vmem:[%s3 + $0xa8] sm:$0xff]
  %v205 = vld [vmem:[%s3 + $0xb0] sm:$0xff]
  %v206 = vld [vmem:[%s3 + $0xb8] sm:$0xff]
  %v207 = vld [vmem:[%s3 + $0xc0] sm:$0xff]
  %v208 = vld [vmem:[%s3 + $0xc8] sm:$0xff]
  %v209 = vld [vmem:[%s3 + $0xd0] sm:$0xff]
  %v210 = vld [vmem:[%s3 + $0xd8] sm:$0xff]
  %v211 = vld [vmem:[%s3 + $0xe0] sm:$0xff]
  %v212 = vld [vmem:[%s3 + $0xe8] sm:$0xff]
  %v213 = vld [vmem:[%s3 + $0xf0] sm:$0xff]
  %v214 = vld [vmem:[%s3 + $0xf8] sm:$0xff]
  %v215 = vld [vmem:[%s3 + $0x100] sm:$0xff]
  %v216 = vld [vmem:[%s3 + $0x108] sm:$0xff]
  %v217 = vld [vmem:[%s3 + $0x110] sm:$0xff]
  %v218 = vld [vmem:[%s3 + $0x118] sm:$0xff]
  %v219 = vld [vmem:[%s3 + $0x120] sm:$0xff]
  %v220 = vld [vmem:[%s3 + $0x128] sm:$0xff]
  %v221 = vld [vmem:[%s3 + $0x130] sm:$0xff]
  %v222 = vld [vmem:[%s3 + $0x138] sm:$0xff]
  %v223 = vld [vmem:[%s3 + $0x140] sm:$0xff]
  %v224 = vld [vmem:[%s3 + $0x148] sm:$0xff]
  %v225 = vld [vmem:[%s3 + $0x150] sm:$0xff]
  %v226 = vld [vmem:[%s3 + $0x158] sm:$0xff]
  %v227 = vld [vmem:[%s3 + $0x160] sm:$0xff]
  %v228 = vld [vmem:[%s3 + $0x168] sm:$0xff]
  %v229 = vld [vmem:[%s3 + $0x170] sm:$0xff]
  %v230 = vld [vmem:[%s3 + $0x178] sm:$0xff]
  %v231 = vld [vmem:[%s3 + $0x180] sm:$0xff]
  %v232 = vld [vmem:[%s3 + $0x188] sm:$0xff]
  %v233 = vld [vmem:[%s3 + $0x190] sm:$0xff]
  %v234 = vld [vmem:[%s3 + $0x198] sm:$0xff]
  %v235 = vld [vmem:[%s3 + $0x1a0] sm:$0xff]
  %v236 = vld [vmem:[%s3 + $0x1a8] sm:$0xff]
  %v237 = vld [vmem:[%s3 + $0x1b0] sm:$0xff]
  %v238 = vld [vmem:[%s3 + $0x1b8] sm:$0xff]
  %v239 = vld [vmem:[%s3 + $0x1c0] sm:$0xff]
  %v240 = vld [vmem:[%s3 + $0x1c8] sm:$0xff]
  %v241 = vld [vmem:[%s3 + $0x1d0] sm:$0xff]
  %v242 = vld [vmem:[%s3 + $0x1d8] sm:$0xff]
  %v243 = vld [vmem:[%s3 + $0x1e0] sm:$0xff]
  %v244 = vld [vmem:[%s3 + $0x1e8] sm:$0xff]
  %v245 = vld [vmem:[%s3 + $0x1f0] sm:$0xff]
  %v246 = vld [vmem:[%s3 + $0x1f8] sm:$0xff]
  %247 = vmatprep.subr.mxu0 %v184
  %248 = vmatpush1.msra.mxu0 %v183
  %249 = vmatprep.subr.mxu0 %v188
  %250 = vmatpush1.msra.mxu0 %v187
  %251 = vmatprep.subr.mxu0 %v192
  %252 = vmatpush1.msra.mxu0 %v191
  %253 = vmatprep.subr.mxu0 %v196
  %254 = vmatpush1.msra.mxu0 %v195
  %255 = vmatprep.subr.mxu0 %v200
  %256 = vmatpush1.msra.mxu0 %v199
  %257 = vmatprep.subr.mxu0 %v204
  %258 = vmatpush1.msra.mxu0 %v203
  %259 = vmatprep.subr.mxu0 %v208
  %260 = vmatpush1.msra.mxu0 %v207
  %261 = vmatprep.subr.mxu0 %v212
  %262 = vmatpush1.msra.mxu0 %v211
  %263 = vmatprep.subr.mxu0 %v216
  %264 = vmatpush1.msra.mxu0 %v215
  %265 = vmatprep.subr.mxu0 %v220
  %266 = vmatpush1.msra.mxu0 %v219
  %267 = vmatprep.subr.mxu0 %v224
  %268 = vmatpush1.msra.mxu0 %v223
  %269 = vmatprep.subr.mxu0 %v228
  %270 = vmatpush1.msra.mxu0 %v227
  %271 = vmatprep.subr.mxu0 %v232
  %272 = vmatpush1.msra.mxu0 %v231
  %273 = vmatprep.subr.mxu0 %v236
  %274 = vmatpush1.msra.mxu0 %v235
  %275 = vmatprep.subr.mxu0 %v240
  %276 = vmatpush1.msra.mxu0 %v239
  %277 = vmatprep.subr.mxu0 %v244
  %278 = vmatpush1.msra.mxu0 %v243
  %279 = vmatprep.subr.mxu0 0.0
  %280 = vmatpush1.msra.mxu0 0.0
  %281 = vmatprep.subr.mxu0 0.0
  %282 = vmatpush1.msra.mxu0 0.0
  %283 = vmatprep.subr.mxu0 0.0
  %284 = vmatpush1.msra.mxu0 0.0
  %285 = vmatprep.subr.mxu0 0.0
  %286 = vmatpush1.msra.mxu0 0.0
  %287 = vmatprep.subr.mxu0 0.0
  %288 = vmatpush1.msra.mxu0 0.0
  %289 = vmatprep.subr.mxu0 0.0
  %290 = vmatpush1.msra.mxu0 0.0
  %291 = vmatprep.subr.mxu0 0.0
  %292 = vmatpush1.msra.mxu0 0.0
  %293 = vmatprep.subr.mxu0 0.0
  %294 = vmatpush1.msra.mxu0 0.0
  %295 = vmatprep.subr.mxu0 0.0
  %296 = vmatpush1.msra.mxu0 0.0
  %297 = vmatprep.subr.mxu0 0.0
  %298 = vmatpush1.msra.mxu0 0.0
  %299 = vmatprep.subr.mxu0 0.0
  %300 = vmatpush1.msra.mxu0 0.0
  %301 = vmatprep.subr.mxu0 0.0
  %302 = vmatpush1.msra.mxu0 0.0
  %303 = vmatprep.subr.mxu0 0.0
  %304 = vmatpush1.msra.mxu0 0.0
  %305 = vmatprep.subr.mxu0 0.0
  %306 = vmatpush1.msra.mxu0 0.0
  %307 = vmatprep.subr.mxu0 0.0
  %308 = vmatpush1.msra.mxu0 0.0
  %309 = vmatprep.subr.mxu0 0.0
  %310 = vmatpush1.msra.mxu0 0.0
  %311 = vmatprep.mubr.f32.mxu0 0.0
  %312 = vmatmul.mubr.f32.gmra.mrb[0].mxu0 %v180
  %v313 = vpop.f32.mrb[0].mxu0
  %v314 = vadd.f32 0.0, %v313
  %v315 = vpop.f32.mrb[0].mxu0
  %v316 = vadd.f32 0.0, %v315
  %317 = vdwg.mxu0
  %318 = vmatprep.subr.mxu0 %v186
  %319 = vmatpush1.msra.mxu0 %v185
  %320 = vmatprep.subr.mxu0 %v190
  %321 = vmatpush1.msra.mxu0 %v189
  %322 = vmatprep.subr.mxu0 %v194
  %323 = vmatpush1.msra.mxu0 %v193
  %324 = vmatprep.subr.mxu0 %v198
  %325 = vmatpush1.msra.mxu0 %v197
  %326 = vmatprep.subr.mxu0 %v202
  %327 = vmatpush1.msra.mxu0 %v201
  %328 = vmatprep.subr.mxu0 %v206
  %329 = vmatpush1.msra.mxu0 %v205
  %330 = vmatprep.subr.mxu0 %v210
  %331 = vmatpush1.msra.mxu0 %v209
  %332 = vmatprep.subr.mxu0 %v214
  %333 = vmatpush1.msra.mxu0 %v213
  %334 = vmatprep.subr.mxu0 %v218
  %335 = vmatpush1.msra.mxu0 %v217
  %336 = vmatprep.subr.mxu0 %v222
  %337 = vmatpush1.msra.mxu0 %v221
  %338 = vmatprep.subr.mxu0 %v226
  %339 = vmatpush1.msra.mxu0 %v225
  %340 = vmatprep.subr.mxu0 %v230
  %341 = vmatpush1.msra.mxu0 %v229
  %342 = vmatprep.subr.mxu0 %v234
  %343 = vmatpush1.msra.mxu0 %v233
  %344 = vmatprep.subr.mxu0 %v238
  %345 = vmatpush1.msra.mxu0 %v237
  %346 = vmatprep.subr.mxu0 %v242
  %347 = vmatpush1.msra.mxu0 %v241
  %348 = vmatprep.subr.mxu0 %v246
  %349 = vmatpush1.msra.mxu0 %v245
  %350 = vmatprep.subr.mxu0 0.0
  %351 = vmatpush1.msra.mxu0 0.0
  %352 = vmatprep.subr.mxu0 0.0
  %353 = vmatpush1.msra.mxu0 0.0
  %354 = vmatprep.subr.mxu0 0.0
  %355 = vmatpush1.msra.mxu0 0.0
  %356 = vmatprep.subr.mxu0 0.0
  %357 = vmatpush1.msra.mxu0 0.0
  %358 = vmatprep.subr.mxu0 0.0
  %359 = vmatpush1.msra.mxu0 0.0
  %360 = vmatprep.subr.mxu0 0.0
  %361 = vmatpush1.msra.mxu0 0.0
  %362 = vmatprep.subr.mxu0 0.0
  %363 = vmatpush1.msra.mxu0 0.0
  %364 = vmatprep.subr.mxu0 0.0
  %365 = vmatpush1.msra.mxu0 0.0
  %366 = vmatprep.subr.mxu0 0.0
  %367 = vmatpush1.msra.mxu0 0.0
  %368 = vmatprep.subr.mxu0 0.0
  %369 = vmatpush1.msra.mxu0 0.0
  %370 = vmatprep.subr.mxu0 0.0
  %371 = vmatpush1.msra.mxu0 0.0
  %372 = vmatprep.subr.mxu0 0.0
  %373 = vmatpush1.msra.mxu0 0.0
  %374 = vmatprep.subr.mxu0 0.0
  %375 = vmatpush1.msra.mxu0 0.0
  %376 = vmatprep.subr.mxu0 0.0
  %377 = vmatpush1.msra.mxu0 0.0
  %378 = vmatprep.subr.mxu0 0.0
  %379 = vmatpush1.msra.mxu0 0.0
  %380 = vmatprep.subr.mxu0 0.0
  %381 = vmatpush1.msra.mxu0 0.0
  %382 = vmatprep.mubr.f32.mxu0 0.0
  %383 = vmatmul.mubr.f32.gmra.mrb[0].mxu0 %v180
  %v384 = vpop.f32.mrb[0].mxu0
  %v385 = vadd.f32 0.0, %v384
  %v386 = vpop.f32.mrb[0].mxu0
  %v387 = vadd.f32 0.0, %v386
  %388 = vdwg.mxu0
  %389 = vst [vmem:[%s4] sm:$0xff] %v314
  %390 = vst [vmem:[%s4 + $0x8] sm:$0xff] %v316
  %391 = vst [vmem:[%s4 + $0x10] sm:$0xff] %v385
  %392 = vst [vmem:[%s4 + $0x18] sm:$0xff] %v387
  // Predicated region
  $region18: #{simple_segmentation_forward.1} parent=0 // pred_check
    _
  $region19: #{simple_segmentation_forward.1} parent=0 // pred_check_branch
    %394 = sbr.rel (0) target = $region21
  $region20: #{simple_segmentation_forward.1} parent=0 // pred_region
    _
  $region21: #{simple_segmentation_forward.1} parent=0 // pred_fallthru
    _
  // Predicated region
  $region22: #{simple_segmentation_forward.1} parent=0 // pred_check
    _
  $region23: #{simple_segmentation_forward.1} parent=0 // pred_check_branch
    %396 = sbr.rel (0) target = $region25
  $region24: #{simple_segmentation_forward.1} parent=0 // pred_region
    _
  $region25: #{simple_segmentation_forward.1} parent=0 // pred_fallthru
    _

</llo_original>
